<compile_context>
chip_gen: v7x
topology: tpu7x:2x2x1
jax: 0.10.0
libtpu: 0.0.40
codegen_flags: <defaults>
</compile_context>

<pallas_src>
import functools

import jax
import jax.numpy as jnp
from jax.experimental import pallas as pl
from jax.experimental.pallas import tpu as pltpu


def _round_up(x, m):
    return ((x + m - 1) // m) * m


# ---------------------------------------------------------------------------
# Layout / packing (done once, outside the kernel)
# ---------------------------------------------------------------------------
# Packed bf16 slab (rows x lanes), everything stored transposed:
#   rows [r_w1, r_w1+C) : [w1 || w4]^T              (C, in_dim)  layer-1, fused heads
#   rows [r_w2, r_w2+C) : blockdiag(w2^T, w5^T)     (C, C)       layer-2 (fused form)
#                         or w2^T / w5^T stacked    (C, H)       (split form, C > 128)
#   rows [r_w3, r_w3+2) : [[w3^T, 0], [0, w6^T]]    (2, C)       layer-3 heads
#   rows [r_b,  r_b+C)  : col0 = b1||b4, col1 = b2||b5, col2[0:2] = [b3, b6]


def make_layout(num_inputs, num_actions, hidden_dim):
    H = hidden_dim
    C = 2 * H                       # fused hidden width (sublane dim of activations)
    in_dim = num_inputs + num_actions
    fused_l2 = C <= 128             # block-diag layer 2 is free while 2H <= MXU width
    lanes = max(in_dim, C, 8)
    r_w1 = 0
    r_w2 = _round_up(C, 16)         # 16-aligned offsets (bf16 sublane packing)
    r_w3 = r_w2 + _round_up(C, 16)
    r_b = r_w3 + 16
    rows = _round_up(r_b + C, 16)
    return dict(NI=num_inputs, NA=num_actions, H=H, C=C, in_dim=in_dim,
                fused_l2=fused_l2, lanes=lanes,
                r_w1=r_w1, r_w2=r_w2, r_w3=r_w3, r_b=r_b, rows=rows)


def init_critic_doubleq_params(key, num_inputs, num_actions, hidden_dim):
    """Xavier-uniform (gain=1) weights stored as (in, out); zero biases (1, out)."""
    in_dim = num_inputs + num_actions

    def xavier(k, fan_in, fan_out):
        bound = jnp.sqrt(6.0 / (fan_in + fan_out))
        return jax.random.uniform(k, (fan_in, fan_out), jnp.float32, -bound, bound)

    ks = jax.random.split(key, 6)
    return {
        "w1": xavier(ks[0], in_dim, hidden_dim),     "b1": jnp.zeros((1, hidden_dim), jnp.float32),
        "w2": xavier(ks[1], hidden_dim, hidden_dim), "b2": jnp.zeros((1, hidden_dim), jnp.float32),
        "w3": xavier(ks[2], hidden_dim, 1),          "b3": jnp.zeros((1, 1), jnp.float32),
        "w4": xavier(ks[3], in_dim, hidden_dim),     "b4": jnp.zeros((1, hidden_dim), jnp.float32),
        "w5": xavier(ks[4], hidden_dim, hidden_dim), "b5": jnp.zeros((1, hidden_dim), jnp.float32),
        "w6": xavier(ks[5], hidden_dim, 1),          "b6": jnp.zeros((1, 1), jnp.float32),
    }


def pack_params(params, layout, dtype=jnp.bfloat16):
    """Pack all 6 weights + 6 biases into one (rows, lanes) bf16 slab. Done once."""
    H, C, IN, L = layout["H"], layout["C"], layout["in_dim"], layout["lanes"]
    r_w1, r_w2, r_w3, r_b = layout["r_w1"], layout["r_w2"], layout["r_w3"], layout["r_b"]
    slab = jnp.zeros((layout["rows"], L), jnp.float32)

    # layer 1: [w1 || w4]^T -> (C, in_dim); rows 0:H = w1^T, rows H:C = w4^T
    w1t = jnp.concatenate([params["w1"], params["w4"]], axis=1).T
    slab = slab.at[r_w1:r_w1 + C, 0:IN].set(w1t)

    # layer 2
    if layout["fused_l2"]:
        slab = slab.at[r_w2:r_w2 + H, 0:H].set(params["w2"].T)
        slab = slab.at[r_w2 + H:r_w2 + C, H:C].set(params["w5"].T)
    else:
        slab = slab.at[r_w2:r_w2 + H, 0:H].set(params["w2"].T)
        slab = slab.at[r_w2 + H:r_w2 + C, 0:H].set(params["w5"].T)

    # layer 3 heads: (2, C); row0 = w3^T (cols 0:H), row1 = w6^T (cols H:C)
    slab = slab.at[r_w3, 0:H].set(params["w3"].reshape(-1))
    slab = slab.at[r_w3 + 1, H:C].set(params["w6"].reshape(-1))

    # biases as columns (broadcast along the lane/batch axis inside the kernel)
    slab = slab.at[r_b:r_b + H, 0].set(params["b1"].reshape(-1))
    slab = slab.at[r_b + H:r_b + C, 0].set(params["b4"].reshape(-1))
    slab = slab.at[r_b:r_b + H, 1].set(params["b2"].reshape(-1))
    slab = slab.at[r_b + H:r_b + C, 1].set(params["b5"].reshape(-1))
    slab = slab.at[r_b, 2].set(params["b3"].reshape(()))
    slab = slab.at[r_b + 1, 2].set(params["b6"].reshape(()))
    return slab.astype(dtype)


# ---------------------------------------------------------------------------
# Kernel
# ---------------------------------------------------------------------------
def _critic_doubleq_kernel(layout, xu_ref, slab_ref, out_ref):
    H, C, IN = layout["H"], layout["C"], layout["in_dim"]
    r_w1, r_w2, r_w3, r_b = layout["r_w1"], layout["r_w2"], layout["r_w3"], layout["r_b"]

    xu = xu_ref[...]                                             # (IN, tb) bf16, batch on lanes
    b1 = slab_ref[r_b:r_b + C, 0:1].astype(jnp.float32)          # (C, 1)
    b2 = slab_ref[r_b:r_b + C, 1:2].astype(jnp.float32)          # (C, 1)
    b3 = slab_ref[r_b:r_b + 2, 2:3].astype(jnp.float32)          # (2, 1) = [b3; b6]

    # layer 1 (both heads fused): (C, IN) @ (IN, tb) -> (C, tb) f32
    h = jnp.dot(slab_ref[r_w1:r_w1 + C, 0:IN], xu,
                preferred_element_type=jnp.float32) + b1
    h = jnp.maximum(h, 0.0).astype(jnp.bfloat16)

    # layer 2
    if layout["fused_l2"]:
        h = jnp.dot(slab_ref[r_w2:r_w2 + C, 0:C], h,
                    preferred_element_type=jnp.float32) + b2
    else:
        hu = jnp.dot(slab_ref[r_w2:r_w2 + H, 0:H], h[0:H, :],
                     preferred_element_type=jnp.float32)
        hl = jnp.dot(slab_ref[r_w2 + H:r_w2 + C, 0:H], h[H:C, :],
                     preferred_element_type=jnp.float32)
        h = jnp.concatenate([hu, hl], axis=0) + b2
    h = jnp.maximum(h, 0.0).astype(jnp.bfloat16)

    # layer 3 heads: (2, C) @ (C, tb) -> (2, tb); row 0 = q1, row 1 = q2 (lane-dense)
    out_ref[...] = jnp.dot(slab_ref[r_w3:r_w3 + 2, 0:C], h,
                           preferred_element_type=jnp.float32) + b3


# ---------------------------------------------------------------------------
# Tiling / wrapper
# ---------------------------------------------------------------------------
_MAX_BATCH_TILE = 2048   # amortizes ~0.35us/step overhead; per-step VMEM is still
                         # only a few hundred KB -> far under every scoped-VMEM default


def _detect_num_tensorcores():
    """v7x (and v4/v5p megacore) expose 2 TensorCores per chip; v5e/v6e expose 1."""
    try:
        kind = jax.devices()[0].device_kind.lower()
    except Exception:
        return 1
    return 2 if any(t in kind for t in ("v7", "v4", "v5p")) else 1


def _choose_tiling(B, num_cores):
    """Return (batch_tile, padded_batch). Batch rides the 128-lane axis, so any
    tile smaller than the full padded batch must be a multiple of 128."""
    if B <= 128 or (num_cores <= 1 and B <= _MAX_BATCH_TILE):
        return B, B                           # single grid step, no padding
    b_pad = _round_up(B, 128 * num_cores)
    best = 128
    tb = 128
    while tb <= _MAX_BATCH_TILE:
        if b_pad % tb == 0 and b_pad // tb >= num_cores:
            best = tb
        tb += 128
    return best, b_pad


def make_critic_forward(layout, num_cores=None):
    if num_cores is None:
        num_cores = _detect_num_tensorcores()
    in_dim, C, H = layout["in_dim"], layout["C"], layout["H"]
    rows, lanes = layout["rows"], layout["lanes"]
    l2_flops = C * C if layout["fused_l2"] else 2 * H * H
    kernel = functools.partial(_critic_doubleq_kernel, layout)

    @jax.jit
    def forward(state, action, slab):
        B = state.shape[0]
        tb, b_pad = _choose_tiling(B, num_cores)
        n_steps = b_pad // tb

        # One tiny XLA concat + cast + transpose: xu^T with batch on the lane axis.
        xu_t = jnp.concatenate([state, action], axis=1).astype(jnp.bfloat16).T
        if b_pad != B:
            xu_t = jnp.pad(xu_t, ((0, 0), (0, b_pad - B)))

        cost = pl.CostEstimate(
            flops=2 * b_pad * (in_dim * C + l2_flops + 2 * C),
            transcendentals=0,
            bytes_accessed=(in_dim * b_pad * 2            # xu^T (bf16)
                            + n_steps * rows * lanes * 2  # weight slab per step (bf16)
                            + 2 * b_pad * 4))             # (2, B) f32 output

        q = pl.pallas_call(
            kernel,
            out_shape=jax.ShapeDtypeStruct((2, b_pad), jnp.float32),
            grid=(n_steps,),
            in_specs=[
                pl.BlockSpec((in_dim, tb), lambda i: (0, i)),   # batch tile of xu^T
                pl.BlockSpec((rows, lanes), lambda i: (0, 0)),  # full weight slab
            ],
            out_specs=pl.BlockSpec((2, tb), lambda i: (0, i)),  # lane-dense (2, B)
            compiler_params=pltpu.CompilerParams(
                dimension_semantics=("parallel",)),
            cost_estimate=cost,
        )(xu_t, slab)

        q = q[:, :B]
        return q[0].reshape(B, 1), q[1].reshape(B, 1)

    return forward


# ---------------------------------------------------------------------------
# References
# ---------------------------------------------------------------------------
def _reference_forward_f32(state, action, params):
    """Pure-JAX f32 reference of the PyTorch forward."""
    xu = jnp.concatenate([state, action], axis=1)
    x1 = jnp.maximum(xu @ params["w1"] + params["b1"], 0.0)
    x1 = jnp.maximum(x1 @ params["w2"] + params["b2"], 0.0)
    x1 = x1 @ params["w3"] + params["b3"]
    x2 = jnp.maximum(xu @ params["w4"] + params["b4"], 0.0)
    x2 = jnp.maximum(x2 @ params["w5"] + params["b5"], 0.0)
    x2 = x2 @ params["w6"] + params["b6"]
    return x1, x2


def _reference_forward_bf16(state, action, params):
    """Reference with the kernel's exact precision recipe (bf16 operands,
    f32 accumulation) — comparable at tight tolerance."""
    c = lambda x: x.astype(jnp.bfloat16).astype(jnp.float32)
    xu = c(jnp.concatenate([state, action], axis=1))

    def head(w_a, b_a, w_b, b_b, w_c, b_c):
        h = c(jnp.maximum(xu @ c(w_a) + c(b_a), 0.0))
        h = c(jnp.maximum(h @ c(w_b) + c(b_b), 0.0))
        return h @ c(w_c) + c(b_c)

    return (head(params["w1"], params["b1"], params["w2"], params["b2"],
                 params["w3"], params["b3"]),
            head(params["w4"], params["b4"], params["w5"], params["b5"],
                 params["w6"], params["b6"]))


if __name__ == "__main__":
    num_inputs, num_actions, hidden_dim = 12, 4, 32

    key = jax.random.PRNGKey(0)
    k_params, k_s1, k_a1, k_s2, k_a2 = jax.random.split(key, 5)

    layout = make_layout(num_inputs, num_actions, hidden_dim)
    params = init_critic_doubleq_params(k_params, num_inputs, num_actions, hidden_dim)
    slab = pack_params(params, layout)                      # packed once (bf16)

    forward = make_critic_forward(layout)                   # auto core count
    forward_2core = make_critic_forward(layout, num_cores=2)  # forces padded 2-step grid

    # ---- small batch: single grid step ----
    B = 8
    state = jax.random.normal(k_s1, (B, num_inputs), jnp.float32)
    action = jax.random.normal(k_a1, (B, num_actions), jnp.float32)
    q1, q2 = forward(state, action, slab)
    jax.block_until_ready((q1, q2))
    r1, r2 = _reference_forward_bf16(state, action, params)
    f1, f2 = _reference_forward_f32(state, action, params)
    assert q1.shape == (B, 1) and q2.shape == (B, 1)
    assert jnp.allclose(q1, r1, atol=2e-3), "Q1 mismatch vs bf16 reference (B=8)"
    assert jnp.allclose(q2, r2, atol=2e-3), "Q2 mismatch vs bf16 reference (B=8)"
    assert jnp.allclose(q1, f1, atol=1e-1), "Q1 drifted from f32 reference (B=8)"
    assert jnp.allclose(q2, f2, atol=1e-1), "Q2 drifted from f32 reference (B=8)"

    # ---- ragged mid-size batch, forced 2-core tiling: padded 2 x 128-lane tiles ----
    B2 = 200
    state2 = jax.random.normal(k_s2, (B2, num_inputs), jnp.float32)
    action2 = jax.random.normal(k_a2, (B2, num_actions), jnp.float32)
    q1b, q2b = forward_2core(state2, action2, slab)
    jax.block_until_ready((q1b, q2b))
    r1b, r2b = _reference_forward_bf16(state2, action2, params)
    assert q1b.shape == (B2, 1) and q2b.shape == (B2, 1)
    assert jnp.allclose(q1b, r1b, atol=2e-3), "Q1 mismatch vs bf16 reference (B=200)"
    assert jnp.allclose(q2b, r2b, atol=2e-3), "Q2 mismatch vs bf16 reference (B=200)"

    # ---- larger batch on the auto-detected layout ----
    B3 = 640
    k_s3, k_a3 = jax.random.split(jax.random.PRNGKey(1))
    state3 = jax.random.normal(k_s3, (B3, num_inputs), jnp.float32)
    action3 = jax.random.normal(k_a3, (B3, num_actions), jnp.float32)
    q1c, q2c = forward(state3, action3, slab)
    jax.block_until_ready((q1c, q2c))
    r1c, r2c = _reference_forward_bf16(state3, action3, params)
    assert jnp.allclose(q1c, r1c, atol=2e-3), "Q1 mismatch vs bf16 reference (B=640)"
    assert jnp.allclose(q2c, r2c, atol=2e-3), "Q2 mismatch vs bf16 reference (B=640)"

    print("KERNEL_OK")
</pallas_src>

<mosaic_0001>
module attributes {stable_mosaic.version = 11 : i64} {
  func.func @_critic_doubleq_kernel(%arg0: i32, %arg1: memref<16x8xbf16, #tpu.memory_space<vmem>>, %arg2: memref<208x64xbf16, #tpu.memory_space<vmem>>, %arg3: memref<2x8xf32, #tpu.memory_space<vmem>>) attributes {dimension_semantics = [#tpu.dimension_semantics<parallel>], iteration_bounds = array<i64: 1>, scalar_prefetch = 0 : i64, scratch_operands = 0 : i64, tpu.core_type = #tpu.core_type<tc>, window_params = [{transform_indices = @transform_0, window_bounds = array<i64: 16, 8>}, {pipeline_mode = #tpu.pipeline_mode<synchronous>, transform_indices = @transform_1, window_bounds = array<i64: 208, 64>}, {transform_indices = @transform_2, window_bounds = array<i64: 2, 8>}]} {
    %c0 = arith.constant 0 : index
    %c0_0 = arith.constant 0 : index
    %0 = vector.load %arg1[%c0, %c0_0] : memref<16x8xbf16, #tpu.memory_space<vmem>>, vector<16x8xbf16>
    %c144 = arith.constant 144 : index
    %c0_1 = arith.constant 0 : index
    %1 = vector.load %arg2[%c144, %c0_1] : memref<208x64xbf16, #tpu.memory_space<vmem>>, vector<64x1xbf16>
    %2 = arith.extf %1 : vector<64x1xbf16> to vector<64x1xf32>
    %c144_2 = arith.constant 144 : index
    %c1 = arith.constant 1 : index
    %3 = vector.load %arg2[%c144_2, %c1] : memref<208x64xbf16, #tpu.memory_space<vmem>>, vector<64x1xbf16>
    %4 = arith.extf %3 : vector<64x1xbf16> to vector<64x1xf32>
    %c144_3 = arith.constant 144 : index
    %c2 = arith.constant 2 : index
    %5 = vector.load %arg2[%c144_3, %c2] : memref<208x64xbf16, #tpu.memory_space<vmem>>, vector<2x1xbf16>
    %6 = arith.extf %5 : vector<2x1xbf16> to vector<2x1xf32>
    %c0_4 = arith.constant 0 : index
    %c0_5 = arith.constant 0 : index
    %7 = vector.load %arg2[%c0_4, %c0_5] : memref<208x64xbf16, #tpu.memory_space<vmem>>, vector<64x16xbf16>
    %cst = arith.constant dense<0.000000e+00> : vector<64x8xf32>
    %8 = tpu.matmul %7, %0, %cst {dimension_numbers = #tpu.dot_dimension_numbers<[1], [0], [0], [1], [0, 0, 1, 1], [], []>} : vector<64x16xbf16>, vector<16x8xbf16>, vector<64x8xf32> -> vector<64x8xf32>
    %9 = vector.broadcast %2 : vector<64x1xf32> to vector<64x8xf32>
    %10 = arith.addf %8, %9 : vector<64x8xf32>
    %cst_6 = arith.constant 0.000000e+00 : f32
    %11 = vector.broadcast %cst_6 : f32 to vector<64x8xf32>
    %12 = arith.maximumf %10, %11 : vector<64x8xf32>
    %13 = arith.truncf %12 : vector<64x8xf32> to vector<64x8xbf16>
    %c64 = arith.constant 64 : index
    %c0_7 = arith.constant 0 : index
    %14 = vector.load %arg2[%c64, %c0_7] : memref<208x64xbf16, #tpu.memory_space<vmem>>, vector<64x64xbf16>
    %cst_8 = arith.constant dense<0.000000e+00> : vector<64x8xf32>
    %15 = tpu.matmul %14, %13, %cst_8 {dimension_numbers = #tpu.dot_dimension_numbers<[1], [0], [0], [1], [0, 0, 1, 1], [], []>} : vector<64x64xbf16>, vector<64x8xbf16>, vector<64x8xf32> -> vector<64x8xf32>
    %16 = vector.broadcast %4 : vector<64x1xf32> to vector<64x8xf32>
    %17 = arith.addf %15, %16 : vector<64x8xf32>
    %cst_9 = arith.constant 0.000000e+00 : f32
    %18 = vector.broadcast %cst_9 : f32 to vector<64x8xf32>
    %19 = arith.maximumf %17, %18 : vector<64x8xf32>
    %20 = arith.truncf %19 : vector<64x8xf32> to vector<64x8xbf16>
    %c128 = arith.constant 128 : index
    %c0_10 = arith.constant 0 : index
    %21 = vector.load %arg2[%c128, %c0_10] : memref<208x64xbf16, #tpu.memory_space<vmem>>, vector<2x64xbf16>
    %cst_11 = arith.constant dense<0.000000e+00> : vector<2x8xf32>
    %22 = tpu.matmul %21, %20, %cst_11 {dimension_numbers = #tpu.dot_dimension_numbers<[1], [0], [0], [1], [0, 0, 1, 1], [], []>} : vector<2x64xbf16>, vector<64x8xbf16>, vector<2x8xf32> -> vector<2x8xf32>
    %23 = vector.broadcast %6 : vector<2x1xf32> to vector<2x8xf32>
    %24 = arith.addf %22, %23 : vector<2x8xf32>
    %c0_12 = arith.constant 0 : index
    %c0_13 = arith.constant 0 : index
    %25 = vector.load %arg3[%c0_12, %c0_13] : memref<2x8xf32, #tpu.memory_space<vmem>>, vector<2x8xf32>
    tpu.vector_store %arg3[%c0_12, %c0_13], %24 {strides = array<i32>} : memref<2x8xf32, #tpu.memory_space<vmem>>, vector<2x8xf32>,
    return
  }
  func.func @transform_0(%arg0: i32) -> (i32, i32) {
    %c0_i32 = arith.constant 0 : i32
    %c0_i32_0 = arith.constant 0 : i32
    return %c0_i32, %arg0 : i32, i32
  }
  func.func @transform_1(%arg0: i32) -> (i32, i32) {
    %c0_i32 = arith.constant 0 : i32
    %c0_i32_0 = arith.constant 0 : i32
    %c0_i32_1 = arith.constant 0 : i32
    return %c0_i32, %c0_i32_0 : i32, i32
  }
  func.func @transform_2(%arg0: i32) -> (i32, i32) {
    %c0_i32 = arith.constant 0 : i32
    %c0_i32_0 = arith.constant 0 : i32
    return %c0_i32, %arg0 : i32, i32
  }
}

</mosaic_0001>

<llo_original>
// kernel: forward.1
$region0: #{forward.1}
  #allocation0 [shape = 'u32[]', space=smem, size = 0x4, offset = 0x4, fixed_abs, tag = 'smem constant byte address 0x4 - core index']
  #allocation1 [shape = 'u32[144,128]{1,0:T(1,128)}', space=vmem, size = 0x12000, scoped, tag = 'internal scratch']
  %s0 = inlined_call_operand.vmem [shape: bf16[16,8], index: 0, kind: input, shape index: {}]
  %s1 = inlined_call_operand.vmem [shape: bf16[208,64], index: 1, kind: input, shape index: {}]
  %s2 = inlined_call_operand.vmem [shape: f32[2,8], index: 2, kind: output, shape index: {}]
  %s3 = sld [smem:[#allocation0]]
  $region18: #{forward.1} parent=0
    _
  %s5 = ssub.s32 1, %s3
  %s6 = scalar_select 0, %s5, %s3
  // Predicated region
  $region2: #{forward.1} parent=0 // pred_check
    _
  $region3: #{forward.1} parent=0 // pred_check_branch
    %8 = sbr.rel (0) target = $region5
  $region4: #{forward.1} parent=0 // pred_region
    _
  $region5: #{forward.1} parent=0 // pred_fallthru
    _
  // Predicated region
  $region6: #{forward.1} parent=0 // pred_check
    _
  $region7: #{forward.1} parent=0 // pred_check_branch
    %10 = sbr.rel (0) target = $region9
  $region8: #{forward.1} parent=0 // pred_region
    _
  $region9: #{forward.1} parent=0 // pred_fallthru
    _
  %v12 = vld [vmem:[%s0] sm:$0xf]
  %v13 = vld [vmem:[%s0 + $0x4] sm:$0xf]
  %v14 = vld [vmem:[%s1 + $0x48] sm:$0xf]
  %v15 = vld [vmem:[%s1 + $0x4c] sm:$0xf]
  %v16 = vld [vmem:[%s1 + $0x50] sm:$0xf]
  %v17 = vld [vmem:[%s1 + $0x54] sm:$0xf]
  %v18 = vld [vmem:[%s1 + $0x58] sm:$0xf]
  %v19 = vld [vmem:[%s1 + $0x5c] sm:$0xf]
  %v20 = vld [vmem:[%s1 + $0x60] sm:$0xf]
  %v21 = vld [vmem:[%s1 + $0x64] sm:$0xf]
  %v22 = vunpack.c.l.bf16 %v14
  %v23 = vunpack.c.l.bf16 %v15
  %v24 = vunpack.c.l.bf16 %v16
  %v25 = vunpack.c.l.bf16 %v17
  %v26 = vunpack.c.l.bf16 %v18
  %v27 = vunpack.c.l.bf16 %v19
  %v28 = vunpack.c.l.bf16 %v20
  %v29 = vunpack.c.l.bf16 %v21
  %v30 = vld [vmem:[%s1 + $0x48] sm:$0x1]
  %v31 = vunpack.c.l.bf16 %v30
  %v32 = vld [vmem:[%s1] sm:$0xf]
  %v33 = vld [vmem:[%s1 + $0x4] sm:$0xf]
  %v34 = vld [vmem:[%s1 + $0x8] sm:$0xf]
  %v35 = vld [vmem:[%s1 + $0xc] sm:$0xf]
  %v36 = vld [vmem:[%s1 + $0x10] sm:$0xf]
  %v37 = vld [vmem:[%s1 + $0x14] sm:$0xf]
  %v38 = vld [vmem:[%s1 + $0x18] sm:$0xf]
  %v39 = vld [vmem:[%s1 + $0x1c] sm:$0xf]
  %41 = vset.pattern.permute.xlu0 0
  %42 = vperm.xlu0 %41, %v22
  %v43 = vpop.permute.xlu0 %42
  %46 = vset.pattern.permute.xlu0 0
  %47 = vperm.xlu0 %46, %v23
  %v48 = vpop.permute.xlu0 %47
  %51 = vset.pattern.permute.xlu0 0
  %52 = vperm.xlu0 %51, %v24
  %v53 = vpop.permute.xlu0 %52
  %56 = vset.pattern.permute.xlu0 0
  %57 = vperm.xlu0 %56, %v25
  %v58 = vpop.permute.xlu0 %57
  %61 = vset.pattern.permute.xlu0 0
  %62 = vperm.xlu0 %61, %v26
  %v63 = vpop.permute.xlu0 %62
  %66 = vset.pattern.permute.xlu0 0
  %67 = vperm.xlu0 %66, %v27
  %v68 = vpop.permute.xlu0 %67
  %71 = vset.pattern.permute.xlu0 0
  %72 = vperm.xlu0 %71, %v28
  %v73 = vpop.permute.xlu0 %72
  %76 = vset.pattern.permute.xlu0 0
  %77 = vperm.xlu0 %76, %v29
  %v78 = vpop.permute.xlu0 %77
  %v88 = vunpack.c.l.b16 %v32
  %v89 = vunpack.c.l.b16 %v33
  %v90 = vunpack.c.l.b16 %v34
  %v91 = vunpack.c.l.b16 %v35
  %v92 = vunpack.c.l.b16 %v36
  %v93 = vunpack.c.l.b16 %v37
  %v94 = vunpack.c.l.b16 %v38
  %v95 = vunpack.c.l.b16 %v39
  %v96 = vpack.c.b16 %v89, %v88
  %v97 = vpack.c.b16 %v91, %v90
  %v98 = vpack.c.b16 %v93, %v92
  %v99 = vpack.c.b16 %v95, %v94
  %v102 = vunpack.c.l.b16 %v12
  %v103 = vunpack.c.l.b16 %v13
  %v104 = vpack.c.b16 %v103, %v102
  %vm106 = vcmask 130048
  %v108 = vsel %vm106, %v96, 0
  %v111 = vsel %vm106, %v97, 0
  %v114 = vsel %vm106, %v98, 0
  %v117 = vsel %vm106, %v99, 0
  %119 = vmatprep.subr.bf16.mxu0 0
  %120 = vmatpush1.bf16.msra.mxu0 %v104
  %121 = vmatprep.subr.bf16.mxu0 0
  %122 = vmatpush1.bf16.msra.mxu0 0
  %123 = vmatprep.subr.bf16.mxu0 0
  %124 = vmatpush1.bf16.msra.mxu0 0
  %125 = vmatprep.subr.bf16.mxu0 0
  %126 = vmatpush1.bf16.msra.mxu0 0
  %127 = vmatprep.subr.bf16.mxu0 0
  %128 = vmatpush1.bf16.msra.mxu0 0
  %129 = vmatprep.subr.bf16.mxu0 0
  %130 = vmatpush1.bf16.msra.mxu0 0
  %131 = vmatprep.subr.bf16.mxu0 0
  %132 = vmatpush1.bf16.msra.mxu0 0
  %133 = vmatprep.subr.bf16.mxu0 0
  %134 = vmatpush1.bf16.msra.mxu0 0
  %135 = vmatprep.subr.bf16.mxu0 0
  %136 = vmatpush1.bf16.msra.mxu0 0
  %137 = vmatprep.subr.bf16.mxu0 0
  %138 = vmatpush1.bf16.msra.mxu0 0
  %139 = vmatprep.subr.bf16.mxu0 0
  %140 = vmatpush1.bf16.msra.mxu0 0
  %141 = vmatprep.subr.bf16.mxu0 0
  %142 = vmatpush1.bf16.msra.mxu0 0
  %143 = vmatprep.subr.bf16.mxu0 0
  %144 = vmatpush1.bf16.msra.mxu0 0
  %145 = vmatprep.subr.bf16.mxu0 0
  %146 = vmatpush1.bf16.msra.mxu0 0
  %147 = vmatprep.subr.bf16.mxu0 0
  %148 = vmatpush1.bf16.msra.mxu0 0
  %149 = vmatprep.subr.bf16.mxu0 0
  %150 = vmatpush1.bf16.msra.mxu0 0
  %151 = vmatprep.mubr.bf16.mxu0 0
  %152 = vmatmul.mubr.bf16.gmra.mrb[0].mxu0 %v108
  %v153 = vpop.f32.mrb[0].mxu0
  %v154 = vadd.f32 %v43, %v153
  %v155 = vpop.f32.mrb[0].mxu0
  %v156 = vpop.f32.mrb[0].mxu0
  %v157 = vadd.f32 %v48, %v156
  %v158 = vpop.f32.mrb[0].mxu0
  %159 = vmatprep.mubr.bf16.mxu0 0
  %160 = vmatmul.mubr.bf16.gmra.mrb[0].mxu0 %v111
  %v161 = vpop.f32.mrb[0].mxu0
  %v162 = vadd.f32 %v53, %v161
  %v163 = vpop.f32.mrb[0].mxu0
  %v164 = vpop.f32.mrb[0].mxu0
  %v165 = vadd.f32 %v58, %v164
  %v166 = vpop.f32.mrb[0].mxu0
  %167 = vmatprep.mubr.bf16.mxu0 0
  %168 = vmatmul.mubr.bf16.gmra.mrb[0].mxu0 %v114
  %v169 = vpop.f32.mrb[0].mxu0
  %v170 = vadd.f32 %v63, %v169
  %v171 = vpop.f32.mrb[0].mxu0
  %v172 = vpop.f32.mrb[0].mxu0
  %v173 = vadd.f32 %v68, %v172
  %v174 = vpop.f32.mrb[0].mxu0
  %175 = vmatprep.mubr.bf16.mxu0 0
  %176 = vmatmul.mubr.bf16.gmra.mrb[0].mxu0 %v117
  %v177 = vpop.f32.mrb[0].mxu0
  %v178 = vadd.f32 %v73, %v177
  %v179 = vpop.f32.mrb[0].mxu0
  %v180 = vpop.f32.mrb[0].mxu0
  %v181 = vadd.f32 %v78, %v180
  %v182 = vpop.f32.mrb[0].mxu0
  %183 = vdwg.mxu0
  %v184 = vmax.f32 %v154, 0.0
  %v185 = vmax.f32 %v157, 0.0
  %v186 = vmax.f32 %v162, 0.0
  %v187 = vmax.f32 %v165, 0.0
  %v188 = vmax.f32 %v170, 0.0
  %v189 = vmax.f32 %v173, 0.0
  %v190 = vmax.f32 %v178, 0.0
  %v191 = vmax.f32 %v181, 0.0
  %v192 = vpack.c.bf16 %v185, %v184
  %v193 = vpack.c.bf16 %v187, %v186
  %v194 = vpack.c.bf16 %v189, %v188
  %v195 = vpack.c.bf16 %v191, %v190
  %v196 = vld [vmem:[%s1 + $0x20] sm:$0xf]
  %v197 = vld [vmem:[%s1 + $0x24] sm:$0xf]
  %v198 = vld [vmem:[%s1 + $0x28] sm:$0xf]
  %v199 = vld [vmem:[%s1 + $0x2c] sm:$0xf]
  %v200 = vld [vmem:[%s1 + $0x30] sm:$0xf]
  %v201 = vld [vmem:[%s1 + $0x34] sm:$0xf]
  %v202 = vld [vmem:[%s1 + $0x38] sm:$0xf]
  %v203 = vld [vmem:[%s1 + $0x3c] sm:$0xf]
  %204 = vset.pattern.permute.xlu0 1
  %205 = vperm.xlu0 %204, %v22
  %v206 = vpop.permute.xlu0 %205
  %208 = vset.pattern.permute.xlu0 1
  %209 = vperm.xlu0 %208, %v23
  %v210 = vpop.permute.xlu0 %209
  %212 = vset.pattern.permute.xlu0 1
  %213 = vperm.xlu0 %212, %v24
  %v214 = vpop.permute.xlu0 %213
  %216 = vset.pattern.permute.xlu0 1
  %217 = vperm.xlu0 %216, %v25
  %v218 = vpop.permute.xlu0 %217
  %220 = vset.pattern.permute.xlu0 1
  %221 = vperm.xlu0 %220, %v26
  %v222 = vpop.permute.xlu0 %221
  %224 = vset.pattern.permute.xlu0 1
  %225 = vperm.xlu0 %224, %v27
  %v226 = vpop.permute.xlu0 %225
  %228 = vset.pattern.permute.xlu0 1
  %229 = vperm.xlu0 %228, %v28
  %v230 = vpop.permute.xlu0 %229
  %232 = vset.pattern.permute.xlu0 1
  %233 = vperm.xlu0 %232, %v29
  %v234 = vpop.permute.xlu0 %233
  %v244 = vunpack.c.l.b16 %v196
  %v245 = vunpack.c.l.b16 %v197
  %v246 = vunpack.c.l.b16 %v198
  %v247 = vunpack.c.l.b16 %v199
  %v248 = vunpack.c.l.b16 %v200
  %v249 = vunpack.c.l.b16 %v201
  %v250 = vunpack.c.l.b16 %v202
  %v251 = vunpack.c.l.b16 %v203
  %v252 = vpack.c.b16 %v245, %v244
  %v253 = vpack.c.b16 %v247, %v246
  %v254 = vpack.c.b16 %v249, %v248
  %v255 = vpack.c.b16 %v251, %v250
  %vm256 = vcmask 523264
  %v258 = vsel %vm256, %v252, 0
  %v261 = vsel %vm256, %v253, 0
  %v264 = vsel %vm256, %v254, 0
  %v267 = vsel %vm256, %v255, 0
  %269 = vmatprep.subr.bf16.mxu0 0
  %270 = vmatpush1.bf16.msra.mxu0 %v192
  %271 = vmatprep.subr.bf16.mxu0 0
  %272 = vmatpush1.bf16.msra.mxu0 %v193
  %273 = vmatprep.subr.bf16.mxu0 0
  %274 = vmatpush1.bf16.msra.mxu0 %v194
  %275 = vmatprep.subr.bf16.mxu0 0
  %276 = vmatpush1.bf16.msra.mxu0 %v195
  %277 = vmatprep.subr.bf16.mxu0 0
  %278 = vmatpush1.bf16.msra.mxu0 0
  %279 = vmatprep.subr.bf16.mxu0 0
  %280 = vmatpush1.bf16.msra.mxu0 0
  %281 = vmatprep.subr.bf16.mxu0 0
  %282 = vmatpush1.bf16.msra.mxu0 0
  %283 = vmatprep.subr.bf16.mxu0 0
  %284 = vmatpush1.bf16.msra.mxu0 0
  %285 = vmatprep.subr.bf16.mxu0 0
  %286 = vmatpush1.bf16.msra.mxu0 0
  %287 = vmatprep.subr.bf16.mxu0 0
  %288 = vmatpush1.bf16.msra.mxu0 0
  %289 = vmatprep.subr.bf16.mxu0 0
  %290 = vmatpush1.bf16.msra.mxu0 0
  %291 = vmatprep.subr.bf16.mxu0 0
  %292 = vmatpush1.bf16.msra.mxu0 0
  %293 = vmatprep.subr.bf16.mxu0 0
  %294 = vmatpush1.bf16.msra.mxu0 0
  %295 = vmatprep.subr.bf16.mxu0 0
  %296 = vmatpush1.bf16.msra.mxu0 0
  %297 = vmatprep.subr.bf16.mxu0 0
  %298 = vmatpush1.bf16.msra.mxu0 0
  %299 = vmatprep.subr.bf16.mxu0 0
  %300 = vmatpush1.bf16.msra.mxu0 0
  %301 = vmatprep.mubr.bf16.mxu0 0
  %302 = vmatmul.mubr.bf16.gmra.mrb[0].mxu0 %v258
  %v303 = vpop.f32.mrb[0].mxu0
  %v304 = vadd.f32 %v206, %v303
  %v305 = vpop.f32.mrb[0].mxu0
  %v306 = vpop.f32.mrb[0].mxu0
  %v307 = vadd.f32 %v210, %v306
  %v308 = vpop.f32.mrb[0].mxu0
  %309 = vmatprep.mubr.bf16.mxu0 0
  %310 = vmatmul.mubr.bf16.gmra.mrb[0].mxu0 %v261
  %v311 = vpop.f32.mrb[0].mxu0
  %v312 = vadd.f32 %v214, %v311
  %v313 = vpop.f32.mrb[0].mxu0
  %v314 = vpop.f32.mrb[0].mxu0
  %v315 = vadd.f32 %v218, %v314
  %v316 = vpop.f32.mrb[0].mxu0
  %317 = vmatprep.mubr.bf16.mxu0 0
  %318 = vmatmul.mubr.bf16.gmra.mrb[0].mxu0 %v264
  %v319 = vpop.f32.mrb[0].mxu0
  %v320 = vadd.f32 %v222, %v319
  %v321 = vpop.f32.mrb[0].mxu0
  %v322 = vpop.f32.mrb[0].mxu0
  %v323 = vadd.f32 %v226, %v322
  %v324 = vpop.f32.mrb[0].mxu0
  %325 = vmatprep.mubr.bf16.mxu0 0
  %326 = vmatmul.mubr.bf16.gmra.mrb[0].mxu0 %v267
  %v327 = vpop.f32.mrb[0].mxu0
  %v328 = vadd.f32 %v230, %v327
  %v329 = vpop.f32.mrb[0].mxu0
  %v330 = vpop.f32.mrb[0].mxu0
  %v331 = vadd.f32 %v234, %v330
  %v332 = vpop.f32.mrb[0].mxu0
  %333 = vdwg.mxu0
  %v334 = vmax.f32 %v304, 0.0
  %v335 = vmax.f32 %v307, 0.0
  %v336 = vmax.f32 %v312, 0.0
  %v337 = vmax.f32 %v315, 0.0
  %v338 = vmax.f32 %v320, 0.0
  %v339 = vmax.f32 %v323, 0.0
  %v340 = vmax.f32 %v328, 0.0
  %v341 = vmax.f32 %v331, 0.0
  %v342 = vpack.c.bf16 %v335, %v334
  %v343 = vpack.c.bf16 %v337, %v336
  %v344 = vpack.c.bf16 %v339, %v338
  %v345 = vpack.c.bf16 %v341, %v340
  %v346 = vld [vmem:[%s1 + $0x40] sm:$0x1]
  %348 = vset.pattern.permute.xlu0 2
  %349 = vperm.xlu0 %348, %v31
  %v350 = vpop.permute.xlu0 %349
  %v353 = vsel %vm256, %v346, 0
  %355 = vmatprep.subr.bf16.mxu0 0
  %356 = vmatpush1.bf16.msra.mxu0 %v342
  %357 = vmatprep.subr.bf16.mxu0 0
  %358 = vmatpush1.bf16.msra.mxu0 %v343
  %359 = vmatprep.subr.bf16.mxu0 0
  %360 = vmatpush1.bf16.msra.mxu0 %v344
  %361 = vmatprep.subr.bf16.mxu0 0
  %362 = vmatpush1.bf16.msra.mxu0 %v345
  %363 = vmatprep.subr.bf16.mxu0 0
  %364 = vmatpush1.bf16.msra.mxu0 0
  %365 = vmatprep.subr.bf16.mxu0 0
  %366 = vmatpush1.bf16.msra.mxu0 0
  %367 = vmatprep.subr.bf16.mxu0 0
  %368 = vmatpush1.bf16.msra.mxu0 0
  %369 = vmatprep.subr.bf16.mxu0 0
  %370 = vmatpush1.bf16.msra.mxu0 0
  %371 = vmatprep.subr.bf16.mxu0 0
  %372 = vmatpush1.bf16.msra.mxu0 0
  %373 = vmatprep.subr.bf16.mxu0 0
  %374 = vmatpush1.bf16.msra.mxu0 0
  %375 = vmatprep.subr.bf16.mxu0 0
  %376 = vmatpush1.bf16.msra.mxu0 0
  %377 = vmatprep.subr.bf16.mxu0 0
  %378 = vmatpush1.bf16.msra.mxu0 0
  %379 = vmatprep.subr.bf16.mxu0 0
  %380 = vmatpush1.bf16.msra.mxu0 0
  %381 = vmatprep.subr.bf16.mxu0 0
  %382 = vmatpush1.bf16.msra.mxu0 0
  %383 = vmatprep.subr.bf16.mxu0 0
  %384 = vmatpush1.bf16.msra.mxu0 0
  %385 = vmatprep.subr.bf16.mxu0 0
  %386 = vmatpush1.bf16.msra.mxu0 0
  %387 = vmatprep.mubr.bf16.mxu0 0
  %388 = vmatmul.mubr.bf16.gmra.mrb[0].mxu0 %v353
  %v389 = vpop.f32.mrb[0].mxu0
  %v390 = vadd.f32 %v350, %v389
  %v391 = vpop.f32.mrb[0].mxu0
  %v392 = vpop.f32.mrb[0].mxu0
  %v393 = vpop.f32.mrb[0].mxu0
  %394 = vdwg.mxu0
  %vm395 = vcmask 58368
  %396 = vst.msk [vmem:[%s2] sm:$0x3] %vm395, %v390
  // Predicated region
  $region10: #{forward.1} parent=0 // pred_check
    _
  $region11: #{forward.1} parent=0 // pred_check_branch
    %398 = sbr.rel (0) target = $region13
  $region12: #{forward.1} parent=0 // pred_region
    _
  $region13: #{forward.1} parent=0 // pred_fallthru
    _
  // Predicated region
  $region14: #{forward.1} parent=0 // pred_check
    _
  $region15: #{forward.1} parent=0 // pred_check_branch
    %400 = sbr.rel (0) target = $region17
  $region16: #{forward.1} parent=0 // pred_region
    _
  $region17: #{forward.1} parent=0 // pred_fallthru
    _

</llo_original>
